<compile_context>
chip_gen: v6e
topology: v6e:2x2x1
jax: 0.10.0
libtpu: 0.0.40
codegen_flags: <defaults>
</compile_context>

<pallas_src>
import functools

import numpy as np
import jax
import jax.numpy as jnp
from jax.experimental import pallas as pl
from jax.experimental.pallas import tpu as pltpu


# ---------------------------------------------------------------------------
# Transform-matrix construction (host-side numpy glue) — exact PyTorch semantics
# ---------------------------------------------------------------------------
def _adaptive_pool_matrix(in_size: int, out_size: int) -> np.ndarray:
    """Row-stochastic P (out, in): pooled = P @ x  (F.adaptive_avg_pool 1D)."""
    M = np.zeros((out_size, in_size), dtype=np.float64)
    for i in range(out_size):
        start = (i * in_size) // out_size
        end = -(-((i + 1) * in_size) // out_size)  # ceil
        M[i, start:end] = 1.0 / (end - start)
    return M


def _bilinear_interp_matrix(out_size: int, in_size: int) -> np.ndarray:
    """I (out, in): up = I @ x, bilinear, align_corners=False (PyTorch)."""
    M = np.zeros((out_size, in_size), dtype=np.float64)
    if in_size == 1:
        M[:, 0] = 1.0
        return M
    scale = in_size / out_size
    for d in range(out_size):
        src = max((d + 0.5) * scale - 0.5, 0.0)
        i0 = min(int(np.floor(src)), in_size - 1)
        i1 = min(i0 + 1, in_size - 1)
        frac = src - i0
        M[d, i0] += 1.0 - frac
        M[d, i1] += frac
    return M


def _separable_matrices(H: int, W: int):
    Ho, Wo = H // 2, W // 2
    Mh = _bilinear_interp_matrix(H, Ho) @ _adaptive_pool_matrix(H, Ho)  # (H, H)
    Mw = _bilinear_interp_matrix(W, Wo) @ _adaptive_pool_matrix(W, Wo)  # (W, W)
    return Mh, Mw


def _round_up(n: int, m: int) -> int:
    return -(-n // m) * m


def _sublane_tile(dtype) -> int:
    """Second-minor tile for a packed dtype: 8 (f32), 16 (bf16/f16), 32 (int8/fp8)."""
    return max(8, 32 // np.dtype(dtype).itemsize)


def _device_info():
    """(physical VMEM bytes per core, has 2 TensorCores, 128-wide-MXU class)."""
    kind = ""
    try:
        kind = jax.devices()[0].device_kind.lower()
    except Exception:
        pass
    vmem = None
    try:
        vmem = int(pltpu.get_tpu_info().vmem_capacity_bytes)
    except Exception:
        vmem = None
    if vmem is None:
        vmem = (64 << 20) if "v7" in kind else (128 << 20)
    two_tc = ("v7" in kind) or ("v4" in kind) or ("v5p" in kind)
    small_mxu = ("v6" not in kind) and ("v7" not in kind)  # v4/v5 family: 128-wide MXU
    return vmem, two_tc, small_mxu


def _vmem_allow(phys_vmem: int) -> int:
    """Generation-aware scoped-VMEM cap (headroom left for compiler scratch)."""
    if phys_vmem >= (128 << 20):                    # v5e / v6e: 128 MiB
        return phys_vmem - (32 << 20)               # ~96 MiB
    return max(24 << 20, phys_vmem - (26 << 20))    # v7x 64 MiB/TC -> ~38 MiB


def _choose_tb(bc, row_io_bytes, row_tmp_bytes, *, min_tb, vmem_budget_bytes,
               two_tc, target_bytes):
    """Rows (planes) per grid step: bytes-driven, VMEM-fitting, sublane-tile aligned."""
    tb = max(min_tb, target_bytes // max(1, row_io_bytes))
    per_row = 2 * row_io_bytes + row_tmp_bytes          # 2x: double-buffered in/out streams
    tb = min(tb, max(min_tb, vmem_budget_bytes // max(1, per_row)))
    steps = 4 if two_tc else 2                          # >= 2 pipeline steps per TensorCore
    if bc >= steps * min_tb:
        tb = min(tb, -(-bc // steps))
    tb = min(tb, _round_up(bc, min_tb))
    tb = max(min_tb, (tb // min_tb) * min_tb)           # dtype-aware sublane alignment
    return int(tb)


def _resident_spec(shape, single_buffer: bool) -> pl.BlockSpec:
    """BlockSpec for a grid-invariant (resident) operand; single-buffer it when possible."""
    index_map = lambda i: (0,) * len(shape)
    if single_buffer:
        return pl.BlockSpec(shape, index_map, pipeline_mode=pl.Buffered(1))
    return pl.BlockSpec(shape, index_map)


# ---------------------------------------------------------------------------
# Kernels
# ---------------------------------------------------------------------------
def _fused_kernel(m_ref, x_ref, o_ref):
    """out (TB, HW) = x (TB, HW) @ M_right (HW, HW); ratio blend is baked into M_right."""
    x = x_ref[...].astype(m_ref.dtype)
    o_ref[...] = jnp.dot(x, m_ref[...],
                         preferred_element_type=jnp.float32).astype(o_ref.dtype)


def _separable_kernel(mwt_ref, mht_ref, x_ref, o_ref, *, H, W, one_minus_r):
    """Large-plane fallback: merged = Mh @ X @ (r*Mw)^T via two large matmuls, then blend."""
    tb = x_ref.shape[0]
    cdt = mwt_ref.dtype
    xc = x_ref[...].reshape(tb, H, W).astype(cdt)            # lane-dense load, then reshape
    # Right multiply as one big matmul: (TB*H, W) @ (r*Mw)^T
    y = jnp.dot(xc.reshape(tb * H, W), mwt_ref[...],
                preferred_element_type=jnp.float32)           # (TB*H, W) f32
    # Left multiply as one big matmul: (TB*W, H) @ Mh^T (XLU transposes overlap the MXU)
    yt = y.reshape(tb, H, W).transpose(0, 2, 1).reshape(tb * W, H)
    z = jnp.dot(yt.astype(cdt), mht_ref[...],
                preferred_element_type=jnp.float32)           # (TB*W, H) f32
    merged = z.reshape(tb, W, H).transpose(0, 2, 1)           # (TB, H, W) f32
    out = one_minus_r * xc + merged                           # blend; promotes to f32
    o_ref[...] = out.reshape(tb, H * W).astype(o_ref.dtype)   # lane-dense store


# ---------------------------------------------------------------------------
# Wrapper
# ---------------------------------------------------------------------------
def token_merging(features: jax.Array, merge_ratio: float = 0.5, *,
                  use_bf16_compute: bool = False) -> jax.Array:
    """Pallas implementation of TokenMerging.forward. features: (B, C, H, W)."""
    B, C, H, W = features.shape
    if not (H > 1 and W > 1):
        return features  # identity branch (matches the PyTorch module)

    r = float(merge_ratio)
    dtype = features.dtype
    compute_dtype = jnp.bfloat16 if (dtype == jnp.bfloat16 or use_bf16_compute) else jnp.float32
    itemsize = np.dtype(dtype).itemsize
    cd_size = np.dtype(compute_dtype).itemsize
    BC, HW = B * C, H * W
    Mh_np, Mw_np = _separable_matrices(H, W)

    phys_vmem, two_tc, small_mxu = _device_info()
    allow = _vmem_allow(phys_vmem)
    fused_hw_limit = 1024 if small_mxu else 2048   # 128-wide MXU parts: fuse only small planes
    min_tb = _sublane_tile(dtype)

    x = features.reshape(BC, HW)                   # contiguous, lane-dense

    if HW <= fused_hw_limit:
        # ---- fused single-matmul path (blend folded into the resident matrix) ----
        M_total = (1.0 - r) * np.eye(HW) + r * np.kron(Mh_np, Mw_np)      # (HW, HW)
        M_right = jnp.asarray(M_total.T.astype(np.float32)).astype(compute_dtype)

        m_bytes = HW * HW * cd_size                # single-buffered resident matrix
        row_io = 2 * HW * itemsize                 # streamed in + out bytes per plane
        row_tmp = HW * (cd_size + 4)               # in-kernel temporaries per plane
        TB = _choose_tb(BC, row_io, row_tmp, min_tb=min_tb,
                        vmem_budget_bytes=allow - m_bytes - (2 << 20),
                        two_tc=two_tc, target_bytes=8 << 20)
        BCp = _round_up(BC, TB)
        if BCp != BC:
            x = jnp.pad(x, ((0, BCp - BC), (0, 0)))

        def run(single_buffer_resident: bool):
            return pl.pallas_call(
                _fused_kernel,
                out_shape=jax.ShapeDtypeStruct((BCp, HW), dtype),
                grid_spec=pltpu.PrefetchScalarGridSpec(
                    num_scalar_prefetch=0,
                    grid=(BCp // TB,),
                    in_specs=[
                        _resident_spec((HW, HW), single_buffer_resident),   # M_right
                        pl.BlockSpec((TB, HW), lambda i: (i, 0)),           # TB planes
                    ],
                    out_specs=pl.BlockSpec((TB, HW), lambda i: (i, 0)),
                ),
                compiler_params=pltpu.CompilerParams(
                    dimension_semantics=("parallel",),
                    vmem_limit_bytes=int(allow),
                ),
            )(M_right, x)

        try:
            out = run(True)
        except Exception:
            out = run(False)   # fallback: default double-buffered resident matrix
    else:
        # ---- separable fallback for large planes ----
        mwt = jnp.asarray((r * Mw_np).T.astype(np.float32)).astype(compute_dtype)  # (W, W)
        mht = jnp.asarray(Mh_np.T.astype(np.float32)).astype(compute_dtype)        # (H, H)

        m_bytes = (H * H + W * W) * cd_size
        row_io = 2 * HW * itemsize
        row_tmp = 6 * HW * 4                        # conservative in-kernel temp estimate
        TB = _choose_tb(BC, row_io, row_tmp, min_tb=min_tb,
                        vmem_budget_bytes=allow - m_bytes - (2 << 20),
                        two_tc=two_tc, target_bytes=4 << 20)
        BCp = _round_up(BC, TB)
        if BCp != BC:
            x = jnp.pad(x, ((0, BCp - BC), (0, 0)))

        kernel = functools.partial(_separable_kernel, H=H, W=W,
                                   one_minus_r=float(1.0 - r))

        def run(single_buffer_resident: bool):
            return pl.pallas_call(
                kernel,
                out_shape=jax.ShapeDtypeStruct((BCp, HW), dtype),
                grid_spec=pltpu.PrefetchScalarGridSpec(
                    num_scalar_prefetch=0,
                    grid=(BCp // TB,),
                    in_specs=[
                        _resident_spec((W, W), single_buffer_resident),   # (r*Mw)^T
                        _resident_spec((H, H), single_buffer_resident),   # Mh^T
                        pl.BlockSpec((TB, HW), lambda i: (i, 0)),         # TB planes, flat
                    ],
                    out_specs=pl.BlockSpec((TB, HW), lambda i: (i, 0)),
                ),
                compiler_params=pltpu.CompilerParams(
                    dimension_semantics=("parallel",),
                    vmem_limit_bytes=int(allow),
                ),
            )(mwt, mht, x)

        try:
            out = run(True)
        except Exception:
            out = run(False)

    if BCp != BC:
        out = out[:BC]
    return out.reshape(B, C, H, W)


# ---------------------------------------------------------------------------
# Pure-numpy reference (same PyTorch semantics), f64 accumulation
# ---------------------------------------------------------------------------
def _reference(features_np: np.ndarray, merge_ratio: float = 0.5) -> np.ndarray:
    B, C, H, W = features_np.shape
    if not (H > 1 and W > 1):
        return features_np.astype(np.float32)
    Mh, Mw = _separable_matrices(H, W)
    x = features_np.astype(np.float64)
    merged = np.einsum("hk,bckl,wl->bchw", Mh, x, Mw)
    out = x * (1.0 - merge_ratio) + merged * merge_ratio
    return out.astype(np.float32)


if __name__ == "__main__":
    k1, k2, k3 = jax.random.split(jax.random.PRNGKey(0), 3)

    # 1) Small-plane fused single-matmul path, f32.
    x1 = jax.random.normal(k1, (2, 4, 16, 16), dtype=jnp.float32)
    out1 = jax.block_until_ready(token_merging(x1, merge_ratio=0.5))
    np.testing.assert_allclose(np.asarray(out1), _reference(np.asarray(x1), 0.5),
                               rtol=1e-5, atol=1e-5)

    # 2) Large-plane separable two-matmul fallback path, f32 (above every fused limit).
    x2 = jax.random.normal(k2, (1, 2, 48, 48), dtype=jnp.float32)
    out2 = jax.block_until_ready(token_merging(x2, merge_ratio=0.5))
    np.testing.assert_allclose(np.asarray(out2), _reference(np.asarray(x2), 0.5),
                               rtol=2e-5, atol=2e-5)

    # 3) bf16 input on the fused path (16-row sublane alignment, bf16 weights, f32 accumulate).
    x3 = jax.random.normal(k3, (2, 4, 16, 16), dtype=jnp.float32).astype(jnp.bfloat16)
    out3 = jax.block_until_ready(token_merging(x3, merge_ratio=0.5))
    ref3 = _reference(np.asarray(x3).astype(np.float32), 0.5)
    np.testing.assert_allclose(np.asarray(out3).astype(np.float32), ref3,
                               rtol=5e-2, atol=5e-2)

    print("KERNEL_OK")
</pallas_src>

<mosaic_0001>
module attributes {stable_mosaic.version = 11 : i64} {
  func.func @_fused_kernel(%arg0: i32, %arg1: memref<256x256xf32, #tpu.memory_space<vmem>>, %arg2: memref<8x256xf32, #tpu.memory_space<vmem>>, %arg3: memref<8x256xf32, #tpu.memory_space<vmem>>) attributes {dimension_semantics = [#tpu.dimension_semantics<parallel>], iteration_bounds = array<i64: 1>, scalar_prefetch = 0 : i64, scratch_operands = 0 : i64, tpu.core_type = #tpu.core_type<tc>, window_params = [{pipeline_mode = #tpu.pipeline_mode<synchronous>, transform_indices = @transform_0, window_bounds = array<i64: 256, 256>}, {transform_indices = @transform_1, window_bounds = array<i64: 8, 256>}, {transform_indices = @transform_2, window_bounds = array<i64: 8, 256>}]} {
    %c0 = arith.constant 0 : index
    %c0_0 = arith.constant 0 : index
    %0 = vector.load %arg2[%c0, %c0_0] : memref<8x256xf32, #tpu.memory_space<vmem>>, vector<8x256xf32>
    %c0_1 = arith.constant 0 : index
    %c0_2 = arith.constant 0 : index
    %1 = vector.load %arg1[%c0_1, %c0_2] : memref<256x256xf32, #tpu.memory_space<vmem>>, vector<256x256xf32>
    %cst = arith.constant dense<0.000000e+00> : vector<8x256xf32>
    %2 = tpu.matmul %0, %1, %cst {dimension_numbers = #tpu.dot_dimension_numbers<[1], [0], [0], [1], [0, 0, 1, 1], [], []>} : vector<8x256xf32>, vector<256x256xf32>, vector<8x256xf32> -> vector<8x256xf32>
    %c0_3 = arith.constant 0 : index
    %c0_4 = arith.constant 0 : index
    %3 = vector.load %arg3[%c0_3, %c0_4] : memref<8x256xf32, #tpu.memory_space<vmem>>, vector<8x256xf32>
    tpu.vector_store %arg3[%c0_3, %c0_4], %2 {strides = array<i32>} : memref<8x256xf32, #tpu.memory_space<vmem>>, vector<8x256xf32>,
    return
  }
  func.func @transform_0(%arg0: i32) -> (i32, i32) {
    %c0_i32 = arith.constant 0 : i32
    %c0_i32_0 = arith.constant 0 : i32
    %c0_i32_1 = arith.constant 0 : i32
    return %c0_i32, %c0_i32_0 : i32, i32
  }
  func.func @transform_1(%arg0: i32) -> (i32, i32) {
    %c0_i32 = arith.constant 0 : i32
    %c0_i32_0 = arith.constant 0 : i32
    return %arg0, %c0_i32 : i32, i32
  }
  func.func @transform_2(%arg0: i32) -> (i32, i32) {
    %c0_i32 = arith.constant 0 : i32
    %c0_i32_0 = arith.constant 0 : i32
    return %arg0, %c0_i32 : i32, i32
  }
}

module attributes {stable_mosaic.version = 11 : i64} {
  func.func @_fused_kernel(%arg0: i32, %arg1: memref<256x256xf32, #tpu.memory_space<vmem>>, %arg2: memref<8x256xf32, #tpu.memory_space<vmem>>, %arg3: memref<8x256xf32, #tpu.memory_space<vmem>>) attributes {dimension_semantics = [#tpu.dimension_semantics<parallel>], iteration_bounds = array<i64: 1>, scalar_prefetch = 0 : i64, scratch_operands = 0 : i64, tpu.core_type = #tpu.core_type<tc>, window_params = [{pipeline_mode = #tpu.pipeline_mode<synchronous>, transform_indices = @transform_0, window_bounds = array<i64: 256, 256>}, {transform_indices = @transform_1, window_bounds = array<i64: 8, 256>}, {transform_indices = @transform_2, window_bounds = array<i64: 8, 256>}]} {
    %c0 = arith.constant 0 : index
    %c0_0 = arith.constant 0 : index
    %0 = vector.load %arg2[%c0, %c0_0] : memref<8x256xf32, #tpu.memory_space<vmem>>, vector<8x256xf32>
    %c0_1 = arith.constant 0 : index
    %c0_2 = arith.constant 0 : index
    %1 = vector.load %arg1[%c0_1, %c0_2] : memref<256x256xf32, #tpu.memory_space<vmem>>, vector<256x256xf32>
    %cst = arith.constant dense<0.000000e+00> : vector<8x256xf32>
    %2 = tpu.matmul %0, %1, %cst {dimension_numbers = #tpu.dot_dimension_numbers<[1], [0], [0], [1], [0, 0, 1, 1], [], []>} : vector<8x256xf32>, vector<256x256xf32>, vector<8x256xf32> -> vector<8x256xf32>
    %c0_3 = arith.constant 0 : index
    %c0_4 = arith.constant 0 : index
    %3 = vector.load %arg3[%c0_3, %c0_4] : memref<8x256xf32, #tpu.memory_space<vmem>>, vector<8x256xf32>
    tpu.vector_store %arg3[%c0_3, %c0_4], %2 {strides = array<i32>} : memref<8x256xf32, #tpu.memory_space<vmem>>, vector<8x256xf32>,
    return
  }
  func.func @transform_0(%arg0: i32) -> (i32, i32) {
    %c0_i32 = arith.constant 0 : i32
    %c0_i32_0 = arith.constant 0 : i32
    %c0_i32_1 = arith.constant 0 : i32
    return %c0_i32, %c0_i32_0 : i32, i32
  }
  func.func @transform_1(%arg0: i32) -> (i32, i32) {
    %c0_i32 = arith.constant 0 : i32
    %c0_i32_0 = arith.constant 0 : i32
    return %arg0, %c0_i32 : i32, i32
  }
  func.func @transform_2(%arg0: i32) -> (i32, i32) {
    %c0_i32 = arith.constant 0 : i32
    %c0_i32_0 = arith.constant 0 : i32
    return %arg0, %c0_i32 : i32, i32
  }
}

</mosaic_0001>

<llo_original>
// kernel: tpu_custom_call.1
$region0: #{tpu_custom_call.1}
  #allocation0 [shape = 'u32[]', space=smem, size = 0x4, offset = 0x4, fixed_abs, tag = 'smem constant byte address 0x4 - core index']
  #allocation1 [shape = 'u32[144,128]{1,0:T(1,128)}', space=vmem, size = 0x12000, scoped, tag = 'internal scratch']
  %s0 = inlined_call_operand.hbm [shape: f32[256,256], index: 0, kind: input, shape index: {}]
  %s1 = inlined_call_operand.hbm [shape: f32[8,256], index: 1, kind: input, shape index: {}]
  %s2 = inlined_call_operand.hbm [shape: f32[8,256], index: 2, kind: output, shape index: {}]
  %s3 = sld [smem:[#allocation0]]
  $region26: #{tpu_custom_call.1} parent=0
    _
  %s5 = ssub.s32 1, %s3
  %s6 = scalar_select 0, %s5, %s3
  $region1: #{tpu_custom_call.1} parent=0
    #allocation2 [shape = 'u8[262144]{0}', space=vmem, size = 0x40000, scoped, tag = 'input window, operand 0, single buffered']
    #allocation3 [shape = 's32[1]{0}', space=sflag, size = 0x4, scoped, tag = 'scoped memory for tpu_custom_call.1']
    #allocation4 [shape = 's32[1]{0}', space=sflag, size = 0x4, scoped, tag = 'scoped memory for tpu_custom_call.1']
    #allocation5 [shape = 'u8[8192]{0}', space=vmem, size = 0x2000, scoped, tag = 'input window, operand 1, single buffered']
    #allocation6 [shape = 's32[1]{0}', space=sflag, size = 0x4, scoped, tag = 'scoped memory for tpu_custom_call.1']
    #allocation7 [shape = 'u8[8192]{0}', space=vmem, size = 0x2000, scoped, tag = 'output window, operand 0, single buffered']
    %7 = vsyncpa [#allocation3], 0
    %8 = vsyncpa [#allocation6], 0
    %9 = vsyncpa [#allocation4], 0
    // Predicated region
    $region2: #{tpu_custom_call.1} parent=1 // pred_check
      _
    $region3: #{tpu_custom_call.1} parent=1 // pred_check_branch
      %11 = sbr.rel (0) target = $region5
    $region4: #{tpu_custom_call.1} parent=1 // pred_region
      %s13 = ssub.s32 8192, 8192
      %14 = vsyncadd [#allocation3], %s13
      %s15 = sshll.u32 [#allocation2], 4
      %s16 = int_to_ptr.vmem [resolvable:$true] %s15
      %21 = dma.hbm_to_vmem [thread:$0]  %s0, 8192, %s16, [#allocation3], 256, 256, 16
    $region5: #{tpu_custom_call.1} parent=1 // pred_fallthru
      _
    // Predicated region
    $region6: #{tpu_custom_call.1} parent=1 // pred_check
      _
    $region7: #{tpu_custom_call.1} parent=1 // pred_check_branch
      %23 = sbr.rel (0) target = $region9
    $region8: #{tpu_custom_call.1} parent=1 // pred_region
      %s25 = ssub.s32 256, 256
      %26 = vsyncadd [#allocation6], %s25
      %s28 = sshll.u32 [#allocation5], 4
      %s29 = int_to_ptr.vmem [resolvable:$true] %s28
      %31 = dma.hbm_to_vmem [thread:$0]  %s1, 256, %s29, [#allocation6]
    $region9: #{tpu_custom_call.1} parent=1 // pred_fallthru
      _
    // Predicated region
    $region10: #{tpu_custom_call.1} parent=1 // pred_check
      _
    $region11: #{tpu_custom_call.1} parent=1 // pred_check_branch
      %33 = sbr.rel (0) target = $region13
    $region12: #{tpu_custom_call.1} parent=1 // pred_region
      %34 = dma.done [#allocation3], 8192
    $region13: #{tpu_custom_call.1} parent=1 // pred_fallthru
      _
    // Predicated region
    $region14: #{tpu_custom_call.1} parent=1 // pred_check
      _
    $region15: #{tpu_custom_call.1} parent=1 // pred_check_branch
      %36 = sbr.rel (0) target = $region17
    $region16: #{tpu_custom_call.1} parent=1 // pred_region
      %37 = dma.done [#allocation6], 256
    $region17: #{tpu_custom_call.1} parent=1 // pred_fallthru
      _
    %v38 = vld [vmem:[#allocation5] sm:$0xff]
    %v39 = vld [vmem:[#allocation5 + $0x8] sm:$0xff]
    %v40 = vld [vmem:[#allocation2] sm:$0xff]
    %v41 = vld [vmem:[#allocation2 + $0x8] sm:$0xff]
    %v42 = vld [vmem:[#allocation2 + $0x10] sm:$0xff]
    %v43 = vld [vmem:[#allocation2 + $0x18] sm:$0xff]
    %v44 = vld [vmem:[#allocation2 + $0x20] sm:$0xff]
    %v45 = vld [vmem:[#allocation2 + $0x28] sm:$0xff]
    %v46 = vld [vmem:[#allocation2 + $0x30] sm:$0xff]
    %v47 = vld [vmem:[#allocation2 + $0x38] sm:$0xff]
    %v48 = vld [vmem:[#allocation2 + $0x40] sm:$0xff]
    %v49 = vld [vmem:[#allocation2 + $0x48] sm:$0xff]
    %v50 = vld [vmem:[#allocation2 + $0x50] sm:$0xff]
    %v51 = vld [vmem:[#allocation2 + $0x58] sm:$0xff]
    %v52 = vld [vmem:[#allocation2 + $0x60] sm:$0xff]
    %v53 = vld [vmem:[#allocation2 + $0x68] sm:$0xff]
    %v54 = vld [vmem:[#allocation2 + $0x70] sm:$0xff]
    %v55 = vld [vmem:[#allocation2 + $0x78] sm:$0xff]
    %v56 = vld [vmem:[#allocation2 + $0x80] sm:$0xff]
    %v57 = vld [vmem:[#allocation2 + $0x88] sm:$0xff]
    %v58 = vld [vmem:[#allocation2 + $0x90] sm:$0xff]
    %v59 = vld [vmem:[#allocation2 + $0x98] sm:$0xff]
    %v60 = vld [vmem:[#allocation2 + $0xa0] sm:$0xff]
    %v61 = vld [vmem:[#allocation2 + $0xa8] sm:$0xff]
    %v62 = vld [vmem:[#allocation2 + $0xb0] sm:$0xff]
    %v63 = vld [vmem:[#allocation2 + $0xb8] sm:$0xff]
    %v64 = vld [vmem:[#allocation2 + $0xc0] sm:$0xff]
    %v65 = vld [vmem:[#allocation2 + $0xc8] sm:$0xff]
    %v66 = vld [vmem:[#allocation2 + $0xd0] sm:$0xff]
    %v67 = vld [vmem:[#allocation2 + $0xd8] sm:$0xff]
    %v68 = vld [vmem:[#allocation2 + $0xe0] sm:$0xff]
    %v69 = vld [vmem:[#allocation2 + $0xe8] sm:$0xff]
    %v70 = vld [vmem:[#allocation2 + $0xf0] sm:$0xff]
    %v71 = vld [vmem:[#allocation2 + $0xf8] sm:$0xff]
    %v72 = vld [vmem:[#allocation2 + $0x100] sm:$0xff]
    %v73 = vld [vmem:[#allocation2 + $0x108] sm:$0xff]
    %v74 = vld [vmem:[#allocation2 + $0x110] sm:$0xff]
    %v75 = vld [vmem:[#allocation2 + $0x118] sm:$0xff]
    %v76 = vld [vmem:[#allocation2 + $0x120] sm:$0xff]
    %v77 = vld [vmem:[#allocation2 + $0x128] sm:$0xff]
    %v78 = vld [vmem:[#allocation2 + $0x130] sm:$0xff]
    %v79 = vld [vmem:[#allocation2 + $0x138] sm:$0xff]
    %v80 = vld [vmem:[#allocation2 + $0x140] sm:$0xff]
    %v81 = vld [vmem:[#allocation2 + $0x148] sm:$0xff]
    %v82 = vld [vmem:[#allocation2 + $0x150] sm:$0xff]
    %v83 = vld [vmem:[#allocation2 + $0x158] sm:$0xff]
    %v84 = vld [vmem:[#allocation2 + $0x160] sm:$0xff]
    %v85 = vld [vmem:[#allocation2 + $0x168] sm:$0xff]
    %v86 = vld [vmem:[#allocation2 + $0x170] sm:$0xff]
    %v87 = vld [vmem:[#allocation2 + $0x178] sm:$0xff]
    %v88 = vld [vmem:[#allocation2 + $0x180] sm:$0xff]
    %v89 = vld [vmem:[#allocation2 + $0x188] sm:$0xff]
    %v90 = vld [vmem:[#allocation2 + $0x190] sm:$0xff]
    %v91 = vld [vmem:[#allocation2 + $0x198] sm:$0xff]
    %v92 = vld [vmem:[#allocation2 + $0x1a0] sm:$0xff]
    %v93 = vld [vmem:[#allocation2 + $0x1a8] sm:$0xff]
    %v94 = vld [vmem:[#allocation2 + $0x1b0] sm:$0xff]
    %v95 = vld [vmem:[#allocation2 + $0x1b8] sm:$0xff]
    %v96 = vld [vmem:[#allocation2 + $0x1c0] sm:$0xff]
    %v97 = vld [vmem:[#allocation2 + $0x1c8] sm:$0xff]
    %v98 = vld [vmem:[#allocation2 + $0x1d0] sm:$0xff]
    %v99 = vld [vmem:[#allocation2 + $0x1d8] sm:$0xff]
    %v100 = vld [vmem:[#allocation2 + $0x1e0] sm:$0xff]
    %v101 = vld [vmem:[#allocation2 + $0x1e8] sm:$0xff]
    %v102 = vld [vmem:[#allocation2 + $0x1f0] sm:$0xff]
    %v103 = vld [vmem:[#allocation2 + $0x1f8] sm:$0xff]
    %104 = vmatprep.subr.mxu0 %v71
    %105 = vmatpush1.msra.mxu0 %v70
    %106 = vmatprep.subr.mxu0 %v69
    %107 = vmatpush1.msra.mxu0 %v68
    %108 = vmatprep.subr.mxu0 %v67
    %109 = vmatpush1.msra.mxu0 %v66
    %110 = vmatprep.subr.mxu0 %v65
    %111 = vmatpush1.msra.mxu0 %v64
    %112 = vmatprep.subr.mxu0 %v63
    %113 = vmatpush1.msra.mxu0 %v62
    %114 = vmatprep.subr.mxu0 %v61
    %115 = vmatpush1.msra.mxu0 %v60
    %116 = vmatprep.subr.mxu0 %v59
    %117 = vmatpush1.msra.mxu0 %v58
    %118 = vmatprep.subr.mxu0 %v57
    %119 = vmatpush1.msra.mxu0 %v56
    %120 = vmatprep.subr.mxu0 %v55
    %121 = vmatpush1.msra.mxu0 %v54
    %122 = vmatprep.subr.mxu0 %v53
    %123 = vmatpush1.msra.mxu0 %v52
    %124 = vmatprep.subr.mxu0 %v51
    %125 = vmatpush1.msra.mxu0 %v50
    %126 = vmatprep.subr.mxu0 %v49
    %127 = vmatpush1.msra.mxu0 %v48
    %128 = vmatprep.subr.mxu0 %v47
    %129 = vmatpush1.msra.mxu0 %v46
    %130 = vmatprep.subr.mxu0 %v45
    %131 = vmatpush1.msra.mxu0 %v44
    %132 = vmatprep.subr.mxu0 %v43
    %133 = vmatpush1.msra.mxu0 %v42
    %134 = vmatprep.subr.mxu0 %v41
    %135 = vmatpush1.msra.mxu0 %v40
    %136 = vmatprep.subr.mxu0 %v103
    %137 = vmatpush2.msra.mxu0 %v102
    %138 = vmatprep.subr.mxu0 %v101
    %139 = vmatpush2.msra.mxu0 %v100
    %140 = vmatprep.subr.mxu0 %v99
    %141 = vmatpush2.msra.mxu0 %v98
    %142 = vmatprep.subr.mxu0 %v97
    %143 = vmatpush2.msra.mxu0 %v96
    %144 = vmatprep.subr.mxu0 %v95
    %145 = vmatpush2.msra.mxu0 %v94
    %146 = vmatprep.subr.mxu0 %v93
    %147 = vmatpush2.msra.mxu0 %v92
    %148 = vmatprep.subr.mxu0 %v91
    %149 = vmatpush2.msra.mxu0 %v90
    %150 = vmatprep.subr.mxu0 %v89
    %151 = vmatpush2.msra.mxu0 %v88
    %152 = vmatprep.subr.mxu0 %v87
    %153 = vmatpush2.msra.mxu0 %v86
    %154 = vmatprep.subr.mxu0 %v85
    %155 = vmatpush2.msra.mxu0 %v84
    %156 = vmatprep.subr.mxu0 %v83
    %157 = vmatpush2.msra.mxu0 %v82
    %158 = vmatprep.subr.mxu0 %v81
    %159 = vmatpush2.msra.mxu0 %v80
    %160 = vmatprep.subr.mxu0 %v79
    %161 = vmatpush2.msra.mxu0 %v78
    %162 = vmatprep.subr.mxu0 %v77
    %163 = vmatpush2.msra.mxu0 %v76
    %164 = vmatprep.subr.mxu0 %v75
    %165 = vmatpush2.msra.mxu0 %v74
    %166 = vmatprep.subr.mxu0 %v73
    %167 = vmatpush2.msra.mxu0 %v72
    %168 = vmatprep.mubr.f32.mxu0 %v39
    %169 = vmatmul.mubr.f32.gmra.mxu0 %v38
    %v170 = vpop.f32.mrf.mxu0
    %v171 = vadd.f32 0.0, %v170
    %v172 = vpop.f32.mrf.mxu0
    %v173 = vadd.f32 0.0, %v172
    %174 = vdwg.mxu0
    %175 = vst [vmem:[#allocation7] sm:$0xff] %v171
    %176 = vst [vmem:[#allocation7 + $0x8] sm:$0xff] %v173
    // Predicated region
    $region18: #{tpu_custom_call.1} parent=1 // pred_check
      _
    $region19: #{tpu_custom_call.1} parent=1 // pred_check_branch
      %178 = sbr.rel (0) target = $region21
    $region20: #{tpu_custom_call.1} parent=1 // pred_region
      %s180 = ssub.s32 256, 256
      %181 = vsyncadd [#allocation4], %s180
      %s183 = sshll.u32 [#allocation7], 4
      %s184 = int_to_ptr.vmem [resolvable:$true] %s183
      %186 = dma.vmem_to_hbm [thread:$0]  %s184, 256, %s2, [#allocation4]
    $region21: #{tpu_custom_call.1} parent=1 // pred_fallthru
      _
    // Predicated region
    $region22: #{tpu_custom_call.1} parent=1 // pred_check
      _
    $region23: #{tpu_custom_call.1} parent=1 // pred_check_branch
      %188 = sbr.rel (0) target = $region25
    $region24: #{tpu_custom_call.1} parent=1 // pred_region
      %189 = dma.done [#allocation4], 256
    $region25: #{tpu_custom_call.1} parent=1 // pred_fallthru
      _
    %190 = vsyncpa [#allocation3], 1
    %191 = vsyncpa [#allocation6], 1
    %192 = vsyncpa [#allocation4], 1

// kernel: tpu_custom_call.1
$region0: #{tpu_custom_call.1}
  #allocation0 [shape = 'u32[]', space=smem, size = 0x4, offset = 0x4, fixed_abs, tag = 'smem constant byte address 0x4 - core index']
  #allocation1 [shape = 'u32[144,128]{1,0:T(1,128)}', space=vmem, size = 0x12000, scoped, tag = 'internal scratch']
  %s0 = inlined_call_operand.hbm [shape: f32[256,256], index: 0, kind: input, shape index: {}]
  %s1 = inlined_call_operand.hbm [shape: f32[8,256], index: 1, kind: input, shape index: {}]
  %s2 = inlined_call_operand.hbm [shape: f32[8,256], index: 2, kind: output, shape index: {}]
  %s3 = sld [smem:[#allocation0]]
  $region26: #{tpu_custom_call.1} parent=0
    _
  %s5 = ssub.s32 1, %s3
  %s6 = scalar_select 0, %s5, %s3
  $region1: #{tpu_custom_call.1} parent=0
    #allocation2 [shape = 'u8[262144]{0}', space=vmem, size = 0x40000, scoped, tag = 'input window, operand 0, single buffered']
    #allocation3 [shape = 's32[1]{0}', space=sflag, size = 0x4, scoped, tag = 'scoped memory for tpu_custom_call.1']
    #allocation4 [shape = 's32[1]{0}', space=sflag, size = 0x4, scoped, tag = 'scoped memory for tpu_custom_call.1']
    #allocation5 [shape = 'u8[8192]{0}', space=vmem, size = 0x2000, scoped, tag = 'input window, operand 1, single buffered']
    #allocation6 [shape = 's32[1]{0}', space=sflag, size = 0x4, scoped, tag = 'scoped memory for tpu_custom_call.1']
    #allocation7 [shape = 'u8[8192]{0}', space=vmem, size = 0x2000, scoped, tag = 'output window, operand 0, single buffered']
    %7 = vsyncpa [#allocation3], 0
    %8 = vsyncpa [#allocation6], 0
    %9 = vsyncpa [#allocation4], 0
    // Predicated region
    $region2: #{tpu_custom_call.1} parent=1 // pred_check
      _
    $region3: #{tpu_custom_call.1} parent=1 // pred_check_branch
      %11 = sbr.rel (0) target = $region5
    $region4: #{tpu_custom_call.1} parent=1 // pred_region
      %s13 = ssub.s32 8192, 8192
      %14 = vsyncadd [#allocation3], %s13
      %s15 = sshll.u32 [#allocation2], 4
      %s16 = int_to_ptr.vmem [resolvable:$true] %s15
      %21 = dma.hbm_to_vmem [thread:$0]  %s0, 8192, %s16, [#allocation3], 256, 256, 16
    $region5: #{tpu_custom_call.1} parent=1 // pred_fallthru
      _
    // Predicated region
    $region6: #{tpu_custom_call.1} parent=1 // pred_check
      _
    $region7: #{tpu_custom_call.1} parent=1 // pred_check_branch
      %23 = sbr.rel (0) target = $region9
    $region8: #{tpu_custom_call.1} parent=1 // pred_region
      %s25 = ssub.s32 256, 256
      %26 = vsyncadd [#allocation6], %s25
      %s28 = sshll.u32 [#allocation5], 4
      %s29 = int_to_ptr.vmem [resolvable:$true] %s28
      %31 = dma.hbm_to_vmem [thread:$0]  %s1, 256, %s29, [#allocation6]
    $region9: #{tpu_custom_call.1} parent=1 // pred_fallthru
      _
    // Predicated region
    $region10: #{tpu_custom_call.1} parent=1 // pred_check
      _
    $region11: #{tpu_custom_call.1} parent=1 // pred_check_branch
      %33 = sbr.rel (0) target = $region13
    $region12: #{tpu_custom_call.1} parent=1 // pred_region
      %34 = dma.done [#allocation3], 8192
    $region13: #{tpu_custom_call.1} parent=1 // pred_fallthru
      _
    // Predicated region
    $region14: #{tpu_custom_call.1} parent=1 // pred_check
      _
    $region15: #{tpu_custom_call.1} parent=1 // pred_check_branch
      %36 = sbr.rel (0) target = $region17
    $region16: #{tpu_custom_call.1} parent=1 // pred_region
      %37 = dma.done [#allocation6], 256
    $region17: #{tpu_custom_call.1} parent=1 // pred_fallthru
      _
    %v38 = vld [vmem:[#allocation5] sm:$0xff]
    %v39 = vld [vmem:[#allocation5 + $0x8] sm:$0xff]
    %v40 = vld [vmem:[#allocation2] sm:$0xff]
    %v41 = vld [vmem:[#allocation2 + $0x8] sm:$0xff]
    %v42 = vld [vmem:[#allocation2 + $0x10] sm:$0xff]
    %v43 = vld [vmem:[#allocation2 + $0x18] sm:$0xff]
    %v44 = vld [vmem:[#allocation2 + $0x20] sm:$0xff]
    %v45 = vld [vmem:[#allocation2 + $0x28] sm:$0xff]
    %v46 = vld [vmem:[#allocation2 + $0x30] sm:$0xff]
    %v47 = vld [vmem:[#allocation2 + $0x38] sm:$0xff]
    %v48 = vld [vmem:[#allocation2 + $0x40] sm:$0xff]
    %v49 = vld [vmem:[#allocation2 + $0x48] sm:$0xff]
    %v50 = vld [vmem:[#allocation2 + $0x50] sm:$0xff]
    %v51 = vld [vmem:[#allocation2 + $0x58] sm:$0xff]
    %v52 = vld [vmem:[#allocation2 + $0x60] sm:$0xff]
    %v53 = vld [vmem:[#allocation2 + $0x68] sm:$0xff]
    %v54 = vld [vmem:[#allocation2 + $0x70] sm:$0xff]
    %v55 = vld [vmem:[#allocation2 + $0x78] sm:$0xff]
    %v56 = vld [vmem:[#allocation2 + $0x80] sm:$0xff]
    %v57 = vld [vmem:[#allocation2 + $0x88] sm:$0xff]
    %v58 = vld [vmem:[#allocation2 + $0x90] sm:$0xff]
    %v59 = vld [vmem:[#allocation2 + $0x98] sm:$0xff]
    %v60 = vld [vmem:[#allocation2 + $0xa0] sm:$0xff]
    %v61 = vld [vmem:[#allocation2 + $0xa8] sm:$0xff]
    %v62 = vld [vmem:[#allocation2 + $0xb0] sm:$0xff]
    %v63 = vld [vmem:[#allocation2 + $0xb8] sm:$0xff]
    %v64 = vld [vmem:[#allocation2 + $0xc0] sm:$0xff]
    %v65 = vld [vmem:[#allocation2 + $0xc8] sm:$0xff]
    %v66 = vld [vmem:[#allocation2 + $0xd0] sm:$0xff]
    %v67 = vld [vmem:[#allocation2 + $0xd8] sm:$0xff]
    %v68 = vld [vmem:[#allocation2 + $0xe0] sm:$0xff]
    %v69 = vld [vmem:[#allocation2 + $0xe8] sm:$0xff]
    %v70 = vld [vmem:[#allocation2 + $0xf0] sm:$0xff]
    %v71 = vld [vmem:[#allocation2 + $0xf8] sm:$0xff]
    %v72 = vld [vmem:[#allocation2 + $0x100] sm:$0xff]
    %v73 = vld [vmem:[#allocation2 + $0x108] sm:$0xff]
    %v74 = vld [vmem:[#allocation2 + $0x110] sm:$0xff]
    %v75 = vld [vmem:[#allocation2 + $0x118] sm:$0xff]
    %v76 = vld [vmem:[#allocation2 + $0x120] sm:$0xff]
    %v77 = vld [vmem:[#allocation2 + $0x128] sm:$0xff]
    %v78 = vld [vmem:[#allocation2 + $0x130] sm:$0xff]
    %v79 = vld [vmem:[#allocation2 + $0x138] sm:$0xff]
    %v80 = vld [vmem:[#allocation2 + $0x140] sm:$0xff]
    %v81 = vld [vmem:[#allocation2 + $0x148] sm:$0xff]
    %v82 = vld [vmem:[#allocation2 + $0x150] sm:$0xff]
    %v83 = vld [vmem:[#allocation2 + $0x158] sm:$0xff]
    %v84 = vld [vmem:[#allocation2 + $0x160] sm:$0xff]
    %v85 = vld [vmem:[#allocation2 + $0x168] sm:$0xff]
    %v86 = vld [vmem:[#allocation2 + $0x170] sm:$0xff]
    %v87 = vld [vmem:[#allocation2 + $0x178] sm:$0xff]
    %v88 = vld [vmem:[#allocation2 + $0x180] sm:$0xff]
    %v89 = vld [vmem:[#allocation2 + $0x188] sm:$0xff]
    %v90 = vld [vmem:[#allocation2 + $0x190] sm:$0xff]
    %v91 = vld [vmem:[#allocation2 + $0x198] sm:$0xff]
    %v92 = vld [vmem:[#allocation2 + $0x1a0] sm:$0xff]
    %v93 = vld [vmem:[#allocation2 + $0x1a8] sm:$0xff]
    %v94 = vld [vmem:[#allocation2 + $0x1b0] sm:$0xff]
    %v95 = vld [vmem:[#allocation2 + $0x1b8] sm:$0xff]
    %v96 = vld [vmem:[#allocation2 + $0x1c0] sm:$0xff]
    %v97 = vld [vmem:[#allocation2 + $0x1c8] sm:$0xff]
    %v98 = vld [vmem:[#allocation2 + $0x1d0] sm:$0xff]
    %v99 = vld [vmem:[#allocation2 + $0x1d8] sm:$0xff]
    %v100 = vld [vmem:[#allocation2 + $0x1e0] sm:$0xff]
    %v101 = vld [vmem:[#allocation2 + $0x1e8] sm:$0xff]
    %v102 = vld [vmem:[#allocation2 + $0x1f0] sm:$0xff]
    %v103 = vld [vmem:[#allocation2 + $0x1f8] sm:$0xff]
    %104 = vmatprep.subr.mxu0 %v71
    %105 = vmatpush1.msra.mxu0 %v70
    %106 = vmatprep.subr.mxu0 %v69
    %107 = vmatpush1.msra.mxu0 %v68
    %108 = vmatprep.subr.mxu0 %v67
    %109 = vmatpush1.msra.mxu0 %v66
    %110 = vmatprep.subr.mxu0 %v65
    %111 = vmatpush1.msra.mxu0 %v64
    %112 = vmatprep.subr.mxu0 %v63
    %113 = vmatpush1.msra.mxu0 %v62
    %114 = vmatprep.subr.mxu0 %v61
    %115 = vmatpush1.msra.mxu0 %v60
    %116 = vmatprep.subr.mxu0 %v59
    %117 = vmatpush1.msra.mxu0 %v58
    %118 = vmatprep.subr.mxu0 %v57
    %119 = vmatpush1.msra.mxu0 %v56
    %120 = vmatprep.subr.mxu0 %v55
    %121 = vmatpush1.msra.mxu0 %v54
    %122 = vmatprep.subr.mxu0 %v53
    %123 = vmatpush1.msra.mxu0 %v52
    %124 = vmatprep.subr.mxu0 %v51
    %125 = vmatpush1.msra.mxu0 %v50
    %126 = vmatprep.subr.mxu0 %v49
    %127 = vmatpush1.msra.mxu0 %v48
    %128 = vmatprep.subr.mxu0 %v47
    %129 = vmatpush1.msra.mxu0 %v46
    %130 = vmatprep.subr.mxu0 %v45
    %131 = vmatpush1.msra.mxu0 %v44
    %132 = vmatprep.subr.mxu0 %v43
    %133 = vmatpush1.msra.mxu0 %v42
    %134 = vmatprep.subr.mxu0 %v41
    %135 = vmatpush1.msra.mxu0 %v40
    %136 = vmatprep.subr.mxu0 %v103
    %137 = vmatpush2.msra.mxu0 %v102
    %138 = vmatprep.subr.mxu0 %v101
    %139 = vmatpush2.msra.mxu0 %v100
    %140 = vmatprep.subr.mxu0 %v99
    %141 = vmatpush2.msra.mxu0 %v98
    %142 = vmatprep.subr.mxu0 %v97
    %143 = vmatpush2.msra.mxu0 %v96
    %144 = vmatprep.subr.mxu0 %v95
    %145 = vmatpush2.msra.mxu0 %v94
    %146 = vmatprep.subr.mxu0 %v93
    %147 = vmatpush2.msra.mxu0 %v92
    %148 = vmatprep.subr.mxu0 %v91
    %149 = vmatpush2.msra.mxu0 %v90
    %150 = vmatprep.subr.mxu0 %v89
    %151 = vmatpush2.msra.mxu0 %v88
    %152 = vmatprep.subr.mxu0 %v87
    %153 = vmatpush2.msra.mxu0 %v86
    %154 = vmatprep.subr.mxu0 %v85
    %155 = vmatpush2.msra.mxu0 %v84
    %156 = vmatprep.subr.mxu0 %v83
    %157 = vmatpush2.msra.mxu0 %v82
    %158 = vmatprep.subr.mxu0 %v81
    %159 = vmatpush2.msra.mxu0 %v80
    %160 = vmatprep.subr.mxu0 %v79
    %161 = vmatpush2.msra.mxu0 %v78
    %162 = vmatprep.subr.mxu0 %v77
    %163 = vmatpush2.msra.mxu0 %v76
    %164 = vmatprep.subr.mxu0 %v75
    %165 = vmatpush2.msra.mxu0 %v74
    %166 = vmatprep.subr.mxu0 %v73
    %167 = vmatpush2.msra.mxu0 %v72
    %168 = vmatprep.mubr.f32.mxu0 %v39
    %169 = vmatmul.mubr.f32.gmra.mxu0 %v38
    %v170 = vpop.f32.mrf.mxu0
    %v171 = vadd.f32 0.0, %v170
    %v172 = vpop.f32.mrf.mxu0
    %v173 = vadd.f32 0.0, %v172
    %174 = vdwg.mxu0
    %175 = vst [vmem:[#allocation7] sm:$0xff] %v171
    %176 = vst [vmem:[#allocation7 + $0x8] sm:$0xff] %v173
    // Predicated region
    $region18: #{tpu_custom_call.1} parent=1 // pred_check
      _
    $region19: #{tpu_custom_call.1} parent=1 // pred_check_branch
      %178 = sbr.rel (0) target = $region21
    $region20: #{tpu_custom_call.1} parent=1 // pred_region
      %s180 = ssub.s32 256, 256
      %181 = vsyncadd [#allocation4], %s180
      %s183 = sshll.u32 [#allocation7], 4
      %s184 = int_to_ptr.vmem [resolvable:$true] %s183
      %186 = dma.vmem_to_hbm [thread:$0]  %s184, 256, %s2, [#allocation4]
    $region21: #{tpu_custom_call.1} parent=1 // pred_fallthru
      _
    // Predicated region
    $region22: #{tpu_custom_call.1} parent=1 // pred_check
      _
    $region23: #{tpu_custom_call.1} parent=1 // pred_check_branch
      %188 = sbr.rel (0) target = $region25
    $region24: #{tpu_custom_call.1} parent=1 // pred_region
      %189 = dma.done [#allocation4], 256
    $region25: #{tpu_custom_call.1} parent=1 // pred_fallthru
      _
    %190 = vsyncpa [#allocation3], 1
    %191 = vsyncpa [#allocation6], 1
    %192 = vsyncpa [#allocation4], 1

</llo_original>
